<compile_context>
chip_gen: v5e
topology: v5e:2x2
jax: 0.10.0
libtpu: 0.0.40
codegen_flags: <defaults>
</compile_context>

<pallas_src>
import jax
import jax.numpy as jnp
from jax.experimental import pallas as pl
from jax.experimental.pallas import tpu as pltpu


def club_forward_kernel(x_ref, y_ref, ey_ref, ey2_ref,
                        w1_ref, b1_ref, w2_ref, b2_ref, out_ref):
    x = x_ref[...].astype(jnp.float32)    # [TM, x_dim]
    y = y_ref[...].astype(jnp.float32)    # [TM, y_dim]
    ey = ey_ref[...]                       # [1, y_dim]   mean_j y[j]
    ey2 = ey2_ref[...]                     # [1, y_dim]   mean_j y[j]^2
    y_dim = y.shape[1]

    # Fused first layer for both heads: [TM, 2*h2]
    h = jnp.dot(x, w1_ref[...], preferred_element_type=jnp.float32) + b1_ref[...]
    h = jnp.maximum(h, 0.0)
    # Fused (block-diagonal) second layer: [TM, 2*y_dim] = [mu | logvar_pre]
    z = jnp.dot(h, w2_ref[...], preferred_element_type=jnp.float32) + b2_ref[...]

    mu = z[:, :y_dim]                      # [TM, y_dim]
    logvar = jnp.tanh(z[:, y_dim:])        # [TM, y_dim]

    inv_2var = 0.5 * jnp.exp(-logvar)      # == 1 / (2 * exp(logvar)); no divides
    # positive - negative (per element), exact moment expansion:
    #   mean_j((y_j - mu)^2) - (mu - y)^2 == (Ey2 - y^2) + 2*mu*(y - Ey)
    val = ((ey2 - y * y) + 2.0 * mu * (y - ey)) * inv_2var   # [TM, y_dim]

    s = jnp.sum(val, axis=1)                   # [TM]   (per-row; ragged tail stays in its own rows)
    out_ref[...] = s.reshape(1, s.shape[0])    # lane-dense (1, TM) write


def pack_params(params, y_dim):
    """Fuse the two heads: W1 -> [x_dim, 2*h2], W2 -> block-diag [2*h2, 2*y_dim]."""
    w1m, b1m, w2m, b2m, w1v, b1v, w2v, b2v = params
    h2 = w1m.shape[1]
    w1 = jnp.concatenate([w1m, w1v], axis=1).astype(jnp.float32)   # [x_dim, 2*h2]
    b1 = jnp.concatenate([b1m, b1v], axis=1).astype(jnp.float32)   # [1, 2*h2]
    w2 = jnp.zeros((2 * h2, 2 * y_dim), jnp.float32)
    w2 = w2.at[:h2, :y_dim].set(w2m).at[h2:, y_dim:].set(w2v)      # block diagonal
    b2 = jnp.concatenate([b2m, b2v], axis=1).astype(jnp.float32)   # [1, 2*y_dim]
    return w1, b1, w2, b2


def club_continuous_forward(x, y, params, *, block_m=8192,
                            vmem_limit_bytes=64 * 1024 * 1024,
                            ey=None, ey2=None):
    """Pallas-backed CLUBContinuous.forward. Returns per-sample values, shape [N]."""
    N, x_dim = x.shape
    _, y_dim = y.shape
    w1, b1, w2, b2 = pack_params(params, y_dim)

    # Batch moments of y (single fused XLA pass).  Pass ey/ey2 explicitly to cache
    # them across calls that reuse y and skip this extra read entirely.
    if ey is None:
        ey = jnp.mean(y, axis=0, keepdims=True, dtype=jnp.float32)           # [1, y_dim]
    if ey2 is None:
        ey2 = jnp.mean(jnp.square(y.astype(jnp.float32)), axis=0, keepdims=True)
    ey = ey.astype(jnp.float32)
    ey2 = ey2.astype(jnp.float32)

    # No padding: the ragged final block is handled by Pallas masked reads/writes.
    tm = N if N <= block_m else block_m
    num_blocks = pl.cdiv(N, tm)

    out = pl.pallas_call(
        club_forward_kernel,
        out_shape=jax.ShapeDtypeStruct((1, N), jnp.float32),
        grid=(num_blocks,),
        in_specs=[
            pl.BlockSpec((tm, x_dim), lambda i: (i, 0)),   # x tile
            pl.BlockSpec((tm, y_dim), lambda i: (i, 0)),   # y tile
            pl.BlockSpec((1, y_dim), lambda i: (0, 0)),    # Ey   (broadcast, VMEM-resident)
            pl.BlockSpec((1, y_dim), lambda i: (0, 0)),    # Ey2  (broadcast)
            pl.BlockSpec(w1.shape, lambda i: (0, 0)),      # fused W1
            pl.BlockSpec(b1.shape, lambda i: (0, 0)),      # fused b1
            pl.BlockSpec(w2.shape, lambda i: (0, 0)),      # block-diag W2
            pl.BlockSpec(b2.shape, lambda i: (0, 0)),      # fused b2
        ],
        out_specs=pl.BlockSpec((1, tm), lambda i: (0, i)),
        compiler_params=pltpu.CompilerParams(
            dimension_semantics=("parallel",),             # independent batch tiles
            vmem_limit_bytes=vmem_limit_bytes,             # big tiles need > scoped default
        ),
    )(x, y, ey, ey2, w1, b1, w2, b2)
    return out[0]


def ref_forward(x, y, params):
    """Pure-JAX reference mirroring the PyTorch module (explicit pairwise term)."""
    w1m, b1m, w2m, b2m, w1v, b1v, w2v, b2v = params
    mu = jnp.maximum(x @ w1m + b1m, 0.0) @ w2m + b2m
    logvar = jnp.tanh(jnp.maximum(x @ w1v + b1v, 0.0) @ w2v + b2v)
    positive = -(mu - y) ** 2 / 2.0 / jnp.exp(logvar)
    diff = y[None, :, :] - mu[:, None, :]
    negative = -jnp.mean(diff ** 2, axis=1) / 2.0 / jnp.exp(logvar)
    return positive.sum(1) - negative.sum(1)


if __name__ == "__main__":
    # Shapes consistent with the module: x_dim=16, y_dim=8, hidden=32.
    x_dim, y_dim, hidden = 16, 8, 32
    h2 = hidden // 2

    key = jax.random.PRNGKey(0)
    keys = jax.random.split(key, 10)

    def lin_init(kw, kb, fan_in, fan_out):
        # Deterministic init mimicking nn.Linear's U(-1/sqrt(fan_in), 1/sqrt(fan_in)).
        bound = 1.0 / float(fan_in) ** 0.5
        w = jax.random.uniform(kw, (fan_in, fan_out), jnp.float32, -bound, bound)
        b = jax.random.uniform(kb, (1, fan_out), jnp.float32, -bound, bound)
        return w, b

    w1m, b1m = lin_init(keys[0], keys[1], x_dim, h2)
    w2m, b2m = lin_init(keys[2], keys[3], h2, y_dim)
    w1v, b1v = lin_init(keys[4], keys[5], x_dim, h2)
    w2v, b2v = lin_init(keys[6], keys[7], h2, y_dim)
    params = (w1m, b1m, w2m, b2m, w1v, b1v, w2v, b2v)

    # Test 1: tiny batch (single full-array block).
    N = 8
    x = jax.random.normal(keys[8], (N, x_dim), jnp.float32)
    y = jax.random.normal(keys[9], (N, y_dim), jnp.float32)
    out = jax.block_until_ready(club_continuous_forward(x, y, params))
    ref = ref_forward(x, y, params)
    assert out.shape == (N,), out.shape
    assert jnp.allclose(out, ref, atol=1e-4, rtol=1e-4), (out, ref)

    # Test 2: multi-block grid with a ragged final block (no-padding path).
    N2 = 300
    x2 = jax.random.normal(keys[8], (N2, x_dim), jnp.float32)
    y2 = jax.random.normal(keys[9], (N2, y_dim), jnp.float32)
    out2 = jax.block_until_ready(club_continuous_forward(x2, y2, params, block_m=128))
    ref2 = ref_forward(x2, y2, params)
    assert out2.shape == (N2,), out2.shape
    assert jnp.allclose(out2, ref2, atol=1e-4, rtol=1e-4), (out2, ref2)

    print("KERNEL_OK")
</pallas_src>

<mosaic_0001>
module attributes {stable_mosaic.version = 11 : i64} {
  func.func @club_forward_kernel(%arg0: i32, %arg1: memref<8x16xf32, #tpu.memory_space<vmem>>, %arg2: memref<8x8xf32, #tpu.memory_space<vmem>>, %arg3: memref<1x8xf32, #tpu.memory_space<vmem>>, %arg4: memref<1x8xf32, #tpu.memory_space<vmem>>, %arg5: memref<16x32xf32, #tpu.memory_space<vmem>>, %arg6: memref<1x32xf32, #tpu.memory_space<vmem>>, %arg7: memref<32x16xf32, #tpu.memory_space<vmem>>, %arg8: memref<1x16xf32, #tpu.memory_space<vmem>>, %arg9: memref<1x8xf32, #tpu.memory_space<vmem>>) attributes {dimension_semantics = [#tpu.dimension_semantics<parallel>], iteration_bounds = array<i64: 1>, scalar_prefetch = 0 : i64, scratch_operands = 0 : i64, tpu.core_type = #tpu.core_type<tc>, window_params = [{transform_indices = @transform_0, window_bounds = array<i64: 8, 16>}, {transform_indices = @transform_1, window_bounds = array<i64: 8, 8>}, {pipeline_mode = #tpu.pipeline_mode<synchronous>, transform_indices = @transform_2, window_bounds = array<i64: 1, 8>}, {pipeline_mode = #tpu.pipeline_mode<synchronous>, transform_indices = @transform_3, window_bounds = array<i64: 1, 8>}, {pipeline_mode = #tpu.pipeline_mode<synchronous>, transform_indices = @transform_4, window_bounds = array<i64: 16, 32>}, {pipeline_mode = #tpu.pipeline_mode<synchronous>, transform_indices = @transform_5, window_bounds = array<i64: 1, 32>}, {pipeline_mode = #tpu.pipeline_mode<synchronous>, transform_indices = @transform_6, window_bounds = array<i64: 32, 16>}, {pipeline_mode = #tpu.pipeline_mode<synchronous>, transform_indices = @transform_7, window_bounds = array<i64: 1, 16>}, {transform_indices = @transform_8, window_bounds = array<i64: 1, 8>}]} {
    %c0 = arith.constant 0 : index
    %c0_0 = arith.constant 0 : index
    %0 = vector.load %arg1[%c0, %c0_0] : memref<8x16xf32, #tpu.memory_space<vmem>>, vector<8x16xf32>
    %c0_1 = arith.constant 0 : index
    %c0_2 = arith.constant 0 : index
    %1 = vector.load %arg2[%c0_1, %c0_2] : memref<8x8xf32, #tpu.memory_space<vmem>>, vector<8x8xf32>
    %c0_3 = arith.constant 0 : index
    %c0_4 = arith.constant 0 : index
    %2 = vector.load %arg3[%c0_3, %c0_4] : memref<1x8xf32, #tpu.memory_space<vmem>>, vector<1x8xf32>
    %c0_5 = arith.constant 0 : index
    %c0_6 = arith.constant 0 : index
    %3 = vector.load %arg4[%c0_5, %c0_6] : memref<1x8xf32, #tpu.memory_space<vmem>>, vector<1x8xf32>
    %c0_7 = arith.constant 0 : index
    %c0_8 = arith.constant 0 : index
    %4 = vector.load %arg5[%c0_7, %c0_8] : memref<16x32xf32, #tpu.memory_space<vmem>>, vector<16x32xf32>
    %cst = arith.constant dense<0.000000e+00> : vector<8x32xf32>
    %5 = tpu.matmul %0, %4, %cst {dimension_numbers = #tpu.dot_dimension_numbers<[1], [0], [0], [1], [0, 0, 1, 1], [], []>} : vector<8x16xf32>, vector<16x32xf32>, vector<8x32xf32> -> vector<8x32xf32>
    %c0_9 = arith.constant 0 : index
    %c0_10 = arith.constant 0 : index
    %6 = vector.load %arg6[%c0_9, %c0_10] : memref<1x32xf32, #tpu.memory_space<vmem>>, vector<1x32xf32>
    %7 = vector.broadcast %6 : vector<1x32xf32> to vector<8x32xf32>
    %8 = arith.addf %5, %7 : vector<8x32xf32>
    %cst_11 = arith.constant 0.000000e+00 : f32
    %9 = vector.broadcast %cst_11 : f32 to vector<8x32xf32>
    %10 = arith.maximumf %8, %9 : vector<8x32xf32>
    %c0_12 = arith.constant 0 : index
    %c0_13 = arith.constant 0 : index
    %11 = vector.load %arg7[%c0_12, %c0_13] : memref<32x16xf32, #tpu.memory_space<vmem>>, vector<32x16xf32>
    %cst_14 = arith.constant dense<0.000000e+00> : vector<8x16xf32>
    %12 = tpu.matmul %10, %11, %cst_14 {dimension_numbers = #tpu.dot_dimension_numbers<[1], [0], [0], [1], [0, 0, 1, 1], [], []>} : vector<8x32xf32>, vector<32x16xf32>, vector<8x16xf32> -> vector<8x16xf32>
    %c0_15 = arith.constant 0 : index
    %c0_16 = arith.constant 0 : index
    %13 = vector.load %arg8[%c0_15, %c0_16] : memref<1x16xf32, #tpu.memory_space<vmem>>, vector<1x16xf32>
    %14 = vector.broadcast %13 : vector<1x16xf32> to vector<8x16xf32>
    %15 = arith.addf %12, %14 : vector<8x16xf32>
    %16 = vector.extract_strided_slice %15 {offsets = [0, 0], sizes = [8, 8], strides = [1, 1]} : vector<8x16xf32> to vector<8x8xf32>
    %17 = vector.extract_strided_slice %15 {offsets = [0, 8], sizes = [8, 8], strides = [1, 1]} : vector<8x16xf32> to vector<8x8xf32>
    %18 = math.tanh %17 : vector<8x8xf32>
    %cst_17 = arith.constant 0.000000e+00 : f32
    %19 = vector.broadcast %cst_17 : f32 to vector<8x8xf32>
    %20 = arith.subf %19, %18 : vector<8x8xf32>
    %21 = math.exp %20 : vector<8x8xf32>
    %cst_18 = arith.constant 5.000000e-01 : f32
    %22 = vector.broadcast %cst_18 : f32 to vector<8x8xf32>
    %23 = arith.mulf %22, %21 : vector<8x8xf32>
    %24 = arith.mulf %1, %1 : vector<8x8xf32>
    %25 = vector.broadcast %3 : vector<1x8xf32> to vector<8x8xf32>
    %26 = arith.subf %25, %24 : vector<8x8xf32>
    %cst_19 = arith.constant 2.000000e+00 : f32
    %27 = vector.broadcast %cst_19 : f32 to vector<8x8xf32>
    %28 = arith.mulf %27, %16 : vector<8x8xf32>
    %29 = vector.broadcast %2 : vector<1x8xf32> to vector<8x8xf32>
    %30 = arith.subf %1, %29 : vector<8x8xf32>
    %31 = arith.mulf %28, %30 : vector<8x8xf32>
    %32 = arith.addf %26, %31 : vector<8x8xf32>
    %33 = arith.mulf %32, %23 : vector<8x8xf32>
    %cst_20 = arith.constant dense<0.000000e+00> : vector<8xf32>
    %34 = vector.multi_reduction <add>, %33, %cst_20 [1] : vector<8x8xf32> to vector<8xf32>
    %35 = vector.shape_cast %34 : vector<8xf32> to vector<1x8xf32>
    %c0_21 = arith.constant 0 : index
    %c0_22 = arith.constant 0 : index
    %36 = vector.load %arg9[%c0_21, %c0_22] : memref<1x8xf32, #tpu.memory_space<vmem>>, vector<1x8xf32>
    tpu.vector_store %arg9[%c0_21, %c0_22], %35 {strides = array<i32>} : memref<1x8xf32, #tpu.memory_space<vmem>>, vector<1x8xf32>,
    return
  }
  func.func @transform_0(%arg0: i32) -> (i32, i32) {
    %c0_i32 = arith.constant 0 : i32
    %c0_i32_0 = arith.constant 0 : i32
    return %arg0, %c0_i32 : i32, i32
  }
  func.func @transform_1(%arg0: i32) -> (i32, i32) {
    %c0_i32 = arith.constant 0 : i32
    %c0_i32_0 = arith.constant 0 : i32
    return %arg0, %c0_i32 : i32, i32
  }
  func.func @transform_2(%arg0: i32) -> (i32, i32) {
    %c0_i32 = arith.constant 0 : i32
    %c0_i32_0 = arith.constant 0 : i32
    %c0_i32_1 = arith.constant 0 : i32
    return %c0_i32, %c0_i32_0 : i32, i32
  }
  func.func @transform_3(%arg0: i32) -> (i32, i32) {
    %c0_i32 = arith.constant 0 : i32
    %c0_i32_0 = arith.constant 0 : i32
    %c0_i32_1 = arith.constant 0 : i32
    return %c0_i32, %c0_i32_0 : i32, i32
  }
  func.func @transform_4(%arg0: i32) -> (i32, i32) {
    %c0_i32 = arith.constant 0 : i32
    %c0_i32_0 = arith.constant 0 : i32
    %c0_i32_1 = arith.constant 0 : i32
    return %c0_i32, %c0_i32_0 : i32, i32
  }
  func.func @transform_5(%arg0: i32) -> (i32, i32) {
    %c0_i32 = arith.constant 0 : i32
    %c0_i32_0 = arith.constant 0 : i32
    %c0_i32_1 = arith.constant 0 : i32
    return %c0_i32, %c0_i32_0 : i32, i32
  }
  func.func @transform_6(%arg0: i32) -> (i32, i32) {
    %c0_i32 = arith.constant 0 : i32
    %c0_i32_0 = arith.constant 0 : i32
    %c0_i32_1 = arith.constant 0 : i32
    return %c0_i32, %c0_i32_0 : i32, i32
  }
  func.func @transform_7(%arg0: i32) -> (i32, i32) {
    %c0_i32 = arith.constant 0 : i32
    %c0_i32_0 = arith.constant 0 : i32
    %c0_i32_1 = arith.constant 0 : i32
    return %c0_i32, %c0_i32_0 : i32, i32
  }
  func.func @transform_8(%arg0: i32) -> (i32, i32) {
    %c0_i32 = arith.constant 0 : i32
    %c0_i32_0 = arith.constant 0 : i32
    return %c0_i32, %arg0 : i32, i32
  }
}

</mosaic_0001>

<llo_original>
// kernel: tpu_custom_call.1
$region0: #{tpu_custom_call.1}
  #allocation0 [shape = 'u32[]', space=smem, size = 0x4, offset = 0x4, fixed_abs, tag = 'smem constant byte address 0x4 - core index']
  #allocation1 [shape = 'u32[72,128]{1,0:T(1,128)}', space=vmem, size = 0x9000, scoped, tag = 'internal scratch']
  %s0 = inlined_call_operand.vmem [shape: f32[8,16], index: 0, kind: input, shape index: {}]
  %s1 = inlined_call_operand.vmem [shape: f32[8,8], index: 1, kind: input, shape index: {}]
  %s2 = inlined_call_operand.vmem [shape: f32[1,8], index: 2, kind: input, shape index: {}]
  %s3 = inlined_call_operand.vmem [shape: f32[1,8], index: 3, kind: input, shape index: {}]
  %s4 = inlined_call_operand.vmem [shape: f32[16,32], index: 4, kind: input, shape index: {}]
  %s5 = inlined_call_operand.vmem [shape: f32[1,32], index: 5, kind: input, shape index: {}]
  %s6 = inlined_call_operand.vmem [shape: f32[32,16], index: 6, kind: input, shape index: {}]
  %s7 = inlined_call_operand.vmem [shape: f32[1,16], index: 7, kind: input, shape index: {}]
  %s8 = inlined_call_operand.hbm [shape: f32[1,8], index: 8, kind: output, shape index: {}]
  %s9 = sld [smem:[#allocation0]]
  $region42: #{tpu_custom_call.1} parent=0
    _
  %s11 = ssub.s32 1, %s9
  %s12 = scalar_select 0, %s11, %s9
  $region1: #{tpu_custom_call.1} parent=0
    #allocation2 [shape = 'u8[512]{0}', space=vmem, size = 0x400, scoped, tag = 'output window, operand 0, single buffered']
    #allocation3 [shape = 's32[1]{0}', space=sflag, size = 0x4, scoped, tag = 'scoped memory for tpu_custom_call.1']
    %13 = vsyncpa [#allocation3], 0
    // Predicated region
    $region2: #{tpu_custom_call.1} parent=1 // pred_check
      _
    $region3: #{tpu_custom_call.1} parent=1 // pred_check_branch
      %15 = sbr.rel (0) target = $region5
    $region4: #{tpu_custom_call.1} parent=1 // pred_region
      _
    $region5: #{tpu_custom_call.1} parent=1 // pred_fallthru
      _
    // Predicated region
    $region6: #{tpu_custom_call.1} parent=1 // pred_check
      _
    $region7: #{tpu_custom_call.1} parent=1 // pred_check_branch
      %17 = sbr.rel (0) target = $region9
    $region8: #{tpu_custom_call.1} parent=1 // pred_region
      _
    $region9: #{tpu_custom_call.1} parent=1 // pred_fallthru
      _
    // Predicated region
    $region10: #{tpu_custom_call.1} parent=1 // pred_check
      _
    $region11: #{tpu_custom_call.1} parent=1 // pred_check_branch
      %19 = sbr.rel (0) target = $region13
    $region12: #{tpu_custom_call.1} parent=1 // pred_region
      _
    $region13: #{tpu_custom_call.1} parent=1 // pred_fallthru
      _
    // Predicated region
    $region14: #{tpu_custom_call.1} parent=1 // pred_check
      _
    $region15: #{tpu_custom_call.1} parent=1 // pred_check_branch
      %21 = sbr.rel (0) target = $region17
    $region16: #{tpu_custom_call.1} parent=1 // pred_region
      _
    $region17: #{tpu_custom_call.1} parent=1 // pred_fallthru
      _
    // Predicated region
    $region18: #{tpu_custom_call.1} parent=1 // pred_check
      _
    $region19: #{tpu_custom_call.1} parent=1 // pred_check_branch
      %23 = sbr.rel (0) target = $region21
    $region20: #{tpu_custom_call.1} parent=1 // pred_region
      _
    $region21: #{tpu_custom_call.1} parent=1 // pred_fallthru
      _
    // Predicated region
    $region22: #{tpu_custom_call.1} parent=1 // pred_check
      _
    $region23: #{tpu_custom_call.1} parent=1 // pred_check_branch
      %25 = sbr.rel (0) target = $region25
    $region24: #{tpu_custom_call.1} parent=1 // pred_region
      _
    $region25: #{tpu_custom_call.1} parent=1 // pred_fallthru
      _
    // Predicated region
    $region26: #{tpu_custom_call.1} parent=1 // pred_check
      _
    $region27: #{tpu_custom_call.1} parent=1 // pred_check_branch
      %27 = sbr.rel (0) target = $region29
    $region28: #{tpu_custom_call.1} parent=1 // pred_region
      _
    $region29: #{tpu_custom_call.1} parent=1 // pred_fallthru
      _
    // Predicated region
    $region30: #{tpu_custom_call.1} parent=1 // pred_check
      _
    $region31: #{tpu_custom_call.1} parent=1 // pred_check_branch
      %29 = sbr.rel (0) target = $region33
    $region32: #{tpu_custom_call.1} parent=1 // pred_region
      _
    $region33: #{tpu_custom_call.1} parent=1 // pred_fallthru
      _
    %v30 = vld [vmem:[%s0] sm:$0xff]
    %v31 = vld [vmem:[%s1] sm:$0xff]
    %v32 = vld [vmem:[%s2] sm:$0x1]
    %v33 = vld [vmem:[%s3] sm:$0x1]
    %v34 = vld [vmem:[%s4] sm:$0xff]
    %v35 = vld [vmem:[%s4 + $0x8] sm:$0xff]
    %v36 = vld [vmem:[%s5] sm:$0x1]
    %v38 = vperm.slane %v36, 0
    %vm40 = vcmask 130048
    %v42 = vsel %vm40, %v30, 0
    %44 = vmatpush.msra.mxu0 0.0
    %45 = vmatpush.msra.mxu0 0.0
    %46 = vmatpush.msra.mxu0 0.0
    %47 = vmatpush.msra.mxu0 0.0
    %48 = vmatpush.msra.mxu0 0.0
    %49 = vmatpush.msra.mxu0 0.0
    %50 = vmatpush.msra.mxu0 0.0
    %51 = vmatpush.msra.mxu0 0.0
    %52 = vmatpush.msra.mxu0 0.0
    %53 = vmatpush.msra.mxu0 0.0
    %54 = vmatpush.msra.mxu0 0.0
    %55 = vmatpush.msra.mxu0 0.0
    %56 = vmatpush.msra.mxu0 0.0
    %57 = vmatpush.msra.mxu0 0.0
    %58 = vmatpush.msra.mxu0 %v35
    %59 = vmatpush.msra.mxu0 %v34
    %60 = vmatmul.f32.gmra.mxu0 %v42
    %v61 = vpop.f32.mrf.mxu0
    %v62 = vadd.f32 %v38, %v61
    %63 = vdwg.mxu0
    %v64 = vmax.f32 %v62, 0.0
    %v65 = vld [vmem:[%s6] sm:$0xff]
    %v66 = vld [vmem:[%s6 + $0x8] sm:$0xff]
    %v67 = vld [vmem:[%s6 + $0x10] sm:$0xff]
    %v68 = vld [vmem:[%s6 + $0x18] sm:$0xff]
    %v69 = vld [vmem:[%s7] sm:$0x1]
    %v71 = vperm.slane %v69, 0
    %vm73 = vcmask 261120
    %v75 = vsel %vm73, %v64, 0
    %77 = vmatpush.msra.mxu0 0.0
    %78 = vmatpush.msra.mxu0 0.0
    %79 = vmatpush.msra.mxu0 0.0
    %80 = vmatpush.msra.mxu0 0.0
    %81 = vmatpush.msra.mxu0 0.0
    %82 = vmatpush.msra.mxu0 0.0
    %83 = vmatpush.msra.mxu0 0.0
    %84 = vmatpush.msra.mxu0 0.0
    %85 = vmatpush.msra.mxu0 0.0
    %86 = vmatpush.msra.mxu0 0.0
    %87 = vmatpush.msra.mxu0 0.0
    %88 = vmatpush.msra.mxu0 0.0
    %89 = vmatpush.msra.mxu0 %v68
    %90 = vmatpush.msra.mxu0 %v67
    %91 = vmatpush.msra.mxu0 %v66
    %92 = vmatpush.msra.mxu0 %v65
    %93 = vmatmul.f32.gmra.mxu0 %v75
    %v94 = vpop.f32.mrf.mxu0
    %v95 = vadd.f32 %v71, %v94
    %96 = vdwg.mxu0
    %v97 = vtanh.pop %v95
    %v98 = vsub.f32 0.0, %v97
    %v99 = vmul.f32 %v98, 1.442695
    %v100 = vpow.pop %v99
    %v101 = vmul.f32 %v100, 0.5
    %v102 = vmul.f32 %v31, %v31
    %v104 = vperm.slane %v33, 0
    %v106 = vsub.f32 %v104, %v102
    %v107 = vmul.f32 %v95, 2.0
    %v109 = vperm.slane %v32, 0
    %v111 = vsub.f32 %v31, %v109
    %v112 = vmul.f32 %v107, %v111
    %v113 = vadd.f32 %v106, %v112
    %115 = vrot.lane.b32.xlu0 %v101, 120
    %v116 = vpop.permute.xlu0 %115
    %v118 = vmul.f32 %v113, %v116
    %vm119 = vcmask 64512
    %v120 = vsel %vm119, %v118, 0.0
    %121 = vadd.xlane.f32.xlu0 %v120
    %v122 = vpop.xlane.xlu0 %121
    %v124 = vlaneseq
    %v125 = vand.u32 %v124, 127
    %v126 = vperm.slane %v122, %v125
    %vm128 = vcmask 57344
    %129 = vst.msk [vmem:[#allocation2] sm:$0x1] %vm128, %v126
    // Predicated region
    $region34: #{tpu_custom_call.1} parent=1 // pred_check
      _
    $region35: #{tpu_custom_call.1} parent=1 // pred_check_branch
      %131 = sbr.rel (0) target = $region37
    $region36: #{tpu_custom_call.1} parent=1 // pred_region
      %133 = vsyncadd [#allocation3], 0
      %s135 = sshll.u32 [#allocation2], 4
      %s136 = int_to_ptr.vmem [resolvable:$true] %s135
      %s137 = sshll.u32 %s8, 4
      %s138 = int_to_ptr.hbm [resolvable:$true] %s137
      %140 = dma.vmem_to_hbm [thread:$0]  %s136, 16, %s138, [#allocation3]
    $region37: #{tpu_custom_call.1} parent=1 // pred_fallthru
      _
    // Predicated region
    $region38: #{tpu_custom_call.1} parent=1 // pred_check
      _
    $region39: #{tpu_custom_call.1} parent=1 // pred_check_branch
      %142 = sbr.rel (0) target = $region41
    $region40: #{tpu_custom_call.1} parent=1 // pred_region
      %144 = dma.done [#allocation3], 16
    $region41: #{tpu_custom_call.1} parent=1 // pred_fallthru
      _
    %145 = vsyncpa [#allocation3], 1

</llo_original>
